<compile_context>
chip_gen: v7x
topology: tpu7x:2x2x1
jax: 0.10.0
libtpu: 0.0.40
codegen_flags: <defaults>
</compile_context>

<pallas_src>
import functools

import jax
import jax.numpy as jnp
from jax.experimental import pallas as pl
from jax.experimental.pallas import tpu as pltpu

PI = 3.141592653589793


def _rotate_reverse_kernel(head_ref, rel_ref, tail_ref, out_ref, *,
                           D, inv_phase_scale, margin):
    # head_ref/tail_ref: (tm, 2D) VMEM tiles; rel_ref: (tm, D); out_ref: (tm, 1).
    phase = rel_ref[...].astype(jnp.float32) * inv_phase_scale
    re_rel = jnp.cos(phase)
    im_rel = jnp.sin(phase)

    head = head_ref[...].astype(jnp.float32)
    tail = tail_ref[...].astype(jnp.float32)
    # Static lane-aligned slices (D % 128 == 0) -> views of the loaded tile.
    re_h, im_h = head[:, :D], head[:, D:]
    re_t, im_t = tail[:, :D], tail[:, D:]

    re_score = re_h * re_rel - im_h * im_rel - re_t
    im_score = re_h * im_rel + im_h * re_rel - im_t

    # torch.stack([re, im], 0).norm(dim=0) == sqrt(re^2 + im^2) elementwise.
    dist = jnp.sqrt(re_score * re_score + im_score * im_score)

    # Sum over the embedding (lane) dim, then margin - score.
    out_ref[...] = margin - jnp.sum(dist, axis=-1, keepdims=True)


def rotate_reverse(head, relation, tail, *, teacher_margin=9.0,
                   teacher_embedding_dim=512, tm=1024):
    """head/tail: (B, N, 2D), relation: (B, N, D) -> (B, N) f32 scores."""
    B, N, D2 = head.shape
    D = D2 // 2
    assert relation.shape == (B, N, D)
    assert tail.shape == (B, N, D2)
    # In-kernel re/im split needs the half-dim to be lane-aligned.
    assert D % 128 == 0, "embedding half-dim D must be a multiple of 128"

    teacher_embedding_range = teacher_margin + 2.0
    # phase = relation / (range / dim / pi) == relation * (dim * pi / range)
    inv_phase_scale = float(teacher_embedding_dim * PI / teacher_embedding_range)

    # Free reshapes only -- no copies, no dtype conversion in HBM.
    M = B * N
    head2 = head.reshape(M, D2)
    tail2 = tail.reshape(M, D2)
    rel2 = relation.reshape(M, D)

    # Tile selection: biggest tile that fits, but keep >= 2 grid steps so the
    # "parallel" axis can shard rows across v7x's two TensorCores.
    tm = max(1, min(tm, M))
    if pl.cdiv(M, tm) < 2 and M >= 16:
        tm = ((-(-M // 2) + 7) // 8) * 8   # ceil(M/2) rounded up to a sublane
    grid = (pl.cdiv(M, tm),)

    head_spec = pl.BlockSpec((tm, D2), lambda i: (i, 0))
    rel_spec = pl.BlockSpec((tm, D), lambda i: (i, 0))
    tail_spec = pl.BlockSpec((tm, D2), lambda i: (i, 0))
    out_spec = pl.BlockSpec((tm, 1), lambda i: (i, 0))

    kernel = functools.partial(
        _rotate_reverse_kernel,
        D=D,
        inv_phase_scale=inv_phase_scale,   # Python floats -> compile-time
        margin=float(teacher_margin),      # literals, not captured constants.
    )

    out = pl.pallas_call(
        kernel,
        out_shape=jax.ShapeDtypeStruct((M, 1), jnp.float32),
        grid=grid,
        in_specs=[head_spec, rel_spec, tail_spec],
        out_specs=out_spec,
        compiler_params=pltpu.CompilerParams(
            dimension_semantics=("parallel",),
            # ~20 MiB double-buffered at tm=1024/D=512; explicit limit keeps
            # the tile sweep portable across v5e/v6e/v7x scoped defaults.
            vmem_limit_bytes=48 << 20,
        ),
    )(head2, rel2, tail2)

    return out.reshape(B, N)


def rotate_reverse_ref(head, relation, tail, *, teacher_margin=9.0,
                       teacher_embedding_dim=512):
    """Pure-JAX reference mirroring the PyTorch forward exactly."""
    teacher_embedding_range = teacher_margin + 2.0
    re_head, im_head = jnp.split(head, 2, axis=2)
    re_tail, im_tail = jnp.split(tail, 2, axis=2)
    phase_relation = relation / (teacher_embedding_range / teacher_embedding_dim / PI)
    re_relation = jnp.cos(phase_relation)
    im_relation = jnp.sin(phase_relation)
    re_score = re_head * re_relation - im_head * im_relation - re_tail
    im_score = re_head * im_relation + im_head * re_relation - im_tail
    score = jnp.sqrt(re_score ** 2 + im_score ** 2)
    score = score.sum(axis=2)
    return teacher_margin - score


if __name__ == "__main__":
    # Small deterministic shapes: B=2 groups, N=8 rows each, half-dim D=128
    # (lane-aligned so the in-kernel re/im split is exact views).
    B, N, D = 2, 8, 128
    teacher_margin = 9.0
    teacher_embedding_dim = D  # constructor arg; only enters via phase scale

    key = jax.random.PRNGKey(0)
    kh, kr, kt = jax.random.split(key, 3)
    head = jax.random.normal(kh, (B, N, 2 * D), dtype=jnp.float32)
    relation = jax.random.normal(kr, (B, N, D), dtype=jnp.float32)
    tail = jax.random.normal(kt, (B, N, 2 * D), dtype=jnp.float32)

    out = rotate_reverse(head, relation, tail,
                         teacher_margin=teacher_margin,
                         teacher_embedding_dim=teacher_embedding_dim)
    out = jax.block_until_ready(out)

    ref = rotate_reverse_ref(head, relation, tail,
                             teacher_margin=teacher_margin,
                             teacher_embedding_dim=teacher_embedding_dim)
    ref = jax.block_until_ready(ref)

    assert out.shape == (B, N), out.shape
    assert jnp.allclose(out, ref, atol=1e-4, rtol=1e-4), (out, ref)
    print("KERNEL_OK")
</pallas_src>

<mosaic_0001>
module attributes {stable_mosaic.version = 11 : i64} {
  func.func @_rotate_reverse_kernel(%arg0: i32, %arg1: memref<8x256xf32, #tpu.memory_space<vmem>>, %arg2: memref<8x128xf32, #tpu.memory_space<vmem>>, %arg3: memref<8x256xf32, #tpu.memory_space<vmem>>, %arg4: memref<8x1xf32, #tpu.memory_space<vmem>>) attributes {dimension_semantics = [#tpu.dimension_semantics<parallel>], iteration_bounds = array<i64: 2>, scalar_prefetch = 0 : i64, scratch_operands = 0 : i64, tpu.core_type = #tpu.core_type<tc>, window_params = [{transform_indices = @transform_0, window_bounds = array<i64: 8, 256>}, {transform_indices = @transform_1, window_bounds = array<i64: 8, 128>}, {transform_indices = @transform_2, window_bounds = array<i64: 8, 256>}, {transform_indices = @transform_3, window_bounds = array<i64: 8, 1>}]} {
    %c0 = arith.constant 0 : index
    %c0_0 = arith.constant 0 : index
    %0 = vector.load %arg2[%c0, %c0_0] : memref<8x128xf32, #tpu.memory_space<vmem>>, vector<8x128xf32>
    %cst = arith.constant 36.5567131 : f32
    %1 = vector.broadcast %cst : f32 to vector<8x128xf32>
    %2 = arith.mulf %0, %1 : vector<8x128xf32>
    %3 = math.cos %2 : vector<8x128xf32>
    %4 = math.sin %2 : vector<8x128xf32>
    %c0_1 = arith.constant 0 : index
    %c0_2 = arith.constant 0 : index
    %5 = vector.load %arg1[%c0_1, %c0_2] : memref<8x256xf32, #tpu.memory_space<vmem>>, vector<8x256xf32>
    %c0_3 = arith.constant 0 : index
    %c0_4 = arith.constant 0 : index
    %6 = vector.load %arg3[%c0_3, %c0_4] : memref<8x256xf32, #tpu.memory_space<vmem>>, vector<8x256xf32>
    %7 = vector.extract_strided_slice %5 {offsets = [0, 0], sizes = [8, 128], strides = [1, 1]} : vector<8x256xf32> to vector<8x128xf32>
    %8 = vector.extract_strided_slice %5 {offsets = [0, 128], sizes = [8, 128], strides = [1, 1]} : vector<8x256xf32> to vector<8x128xf32>
    %9 = vector.extract_strided_slice %6 {offsets = [0, 0], sizes = [8, 128], strides = [1, 1]} : vector<8x256xf32> to vector<8x128xf32>
    %10 = vector.extract_strided_slice %6 {offsets = [0, 128], sizes = [8, 128], strides = [1, 1]} : vector<8x256xf32> to vector<8x128xf32>
    %11 = arith.mulf %7, %3 : vector<8x128xf32>
    %12 = arith.mulf %8, %4 : vector<8x128xf32>
    %13 = arith.subf %11, %12 : vector<8x128xf32>
    %14 = arith.subf %13, %9 : vector<8x128xf32>
    %15 = arith.mulf %7, %4 : vector<8x128xf32>
    %16 = arith.mulf %8, %3 : vector<8x128xf32>
    %17 = arith.addf %15, %16 : vector<8x128xf32>
    %18 = arith.subf %17, %10 : vector<8x128xf32>
    %19 = arith.mulf %14, %14 : vector<8x128xf32>
    %20 = arith.mulf %18, %18 : vector<8x128xf32>
    %21 = arith.addf %19, %20 : vector<8x128xf32>
    %22 = math.sqrt %21 : vector<8x128xf32>
    %cst_5 = arith.constant dense<0.000000e+00> : vector<8xf32>
    %23 = vector.multi_reduction <add>, %22, %cst_5 [1] : vector<8x128xf32> to vector<8xf32>
    %24 = vector.shape_cast %23 : vector<8xf32> to vector<8x1xf32>
    %cst_6 = arith.constant 9.000000e+00 : f32
    %25 = vector.broadcast %cst_6 : f32 to vector<8x1xf32>
    %26 = arith.subf %25, %24 : vector<8x1xf32>
    %c0_7 = arith.constant 0 : index
    %c0_8 = arith.constant 0 : index
    %27 = vector.load %arg4[%c0_7, %c0_8] : memref<8x1xf32, #tpu.memory_space<vmem>>, vector<8x1xf32>
    tpu.vector_store %arg4[%c0_7, %c0_8], %26 {strides = array<i32>} : memref<8x1xf32, #tpu.memory_space<vmem>>, vector<8x1xf32>,
    return
  }
  func.func @transform_0(%arg0: i32) -> (i32, i32) {
    %c0_i32 = arith.constant 0 : i32
    %c0_i32_0 = arith.constant 0 : i32
    return %arg0, %c0_i32 : i32, i32
  }
  func.func @transform_1(%arg0: i32) -> (i32, i32) {
    %c0_i32 = arith.constant 0 : i32
    %c0_i32_0 = arith.constant 0 : i32
    return %arg0, %c0_i32 : i32, i32
  }
  func.func @transform_2(%arg0: i32) -> (i32, i32) {
    %c0_i32 = arith.constant 0 : i32
    %c0_i32_0 = arith.constant 0 : i32
    return %arg0, %c0_i32 : i32, i32
  }
  func.func @transform_3(%arg0: i32) -> (i32, i32) {
    %c0_i32 = arith.constant 0 : i32
    %c0_i32_0 = arith.constant 0 : i32
    return %arg0, %c0_i32 : i32, i32
  }
}

</mosaic_0001>

<llo_original>
// kernel: tpu_custom_call.1
$region0: #{tpu_custom_call.1}
  #allocation0 [shape = 'u32[]', space=smem, size = 0x4, offset = 0x4, fixed_abs, tag = 'smem constant byte address 0x4 - core index']
  #allocation1 [shape = 'u32[144,128]{1,0:T(1,128)}', space=vmem, size = 0x12000, scoped, tag = 'internal scratch']
  %s0 = inlined_call_operand.hbm [shape: f32[16,256], index: 0, kind: input, shape index: {}]
  %s1 = inlined_call_operand.hbm [shape: f32[16,128], index: 1, kind: input, shape index: {}]
  %s2 = inlined_call_operand.hbm [shape: f32[16,256], index: 2, kind: input, shape index: {}]
  %s3 = inlined_call_operand.vmem [shape: f32[16,1], index: 3, kind: output, shape index: {}]
  %s4 = sld [smem:[#allocation0]]
  $region57: #{tpu_custom_call.1} parent=0
    _
  %s6 = ssub.s32 1, %s4
  %s7 = scalar_select 0, %s6, %s4
  $region1: #{tpu_custom_call.1} parent=0
    #allocation2 [shape = 'u8[16384]{0}', space=vmem, size = 0x4000, scoped, tag = 'input window, operand 0']
    #allocation3 [shape = 's32[2]{0}', space=sflag, size = 0x8, scoped, tag = 'scoped memory for tpu_custom_call.1']
    #allocation4 [shape = 'u8[8192]{0}', space=vmem, size = 0x2000, scoped, tag = 'input window, operand 1']
    #allocation5 [shape = 's32[2]{0}', space=sflag, size = 0x8, scoped, tag = 'scoped memory for tpu_custom_call.1']
    #allocation6 [shape = 'u8[16384]{0}', space=vmem, size = 0x4000, scoped, tag = 'input window, operand 2']
    %8 = vsyncpa [#allocation3], 0
    %s9 = scalar_lea.sflag [#allocation3], 1
    %10 = vsyncpa %s9, 0
    %11 = vsyncpa [#allocation5], 0
    %s12 = scalar_lea.sflag [#allocation5], 1
    %13 = vsyncpa %s12, 0
    loop: start=0, step=1, limit=4
    $region2: #{tpu_custom_call.1} parent=1 // loop_pre_header
      _
    $region3: #{tpu_custom_call.1} parent=1 // loop_header
      %s15 = sphi 0, %s19
      %p16 = scmp.ge.s32.totalorder %s15, 4
      %s25 = sphi 0, %s27
      %s28 = sphi 0, %s25
      %s29 = sphi 0, %s28
      %s45 = sphi 0, %s29
      %s51 = sphi 0, %s53
      %s54 = sphi 0, %s51
      %s55 = sphi 0, %s54
      %s71 = sphi 0, %s55
      %s77 = sphi 0, %s79
      %s80 = sphi 0, %s77
      %s81 = sphi 0, %s80
      %s97 = sphi 0, %s81
      %s103 = sphi 0, %s105
      %s106 = sphi 0, %s103
      %s107 = sphi 0, %s106
      %s123 = sphi 0, %s107
    $region4: #{tpu_custom_call.1} parent=1 // loop_header_branch
      %18 = sbr.rel (%p16) target = $region8
    $region5: #{tpu_custom_call.1} parent=1 // loop_body
      %s20 = ssub.s32 %s15, 1
      %s21 = ssub.s32 %s15, 2
      %s22 = sadd.s32 %s15, 1
      %s23 = ssub.s32 %s15, %s22
      %p24 = scmp.eq.s32.totalorder %s23, 0
      %s26 = sadd.s32 %s25, 1
      %s27 = scalar_select %p24, %s25, %s26
      %p30 = pneg %p24
      %p31 = scmp.eq.s32.totalorder %s15, 1
      %p32 = por %p30, %p31
      %p33 = scmp.ne.s32.totalorder %s25, %s28
      %p34 = scmp.eq.s32.totalorder %s15, 0
      %p35 = por %p33, %p34
      %p36 = scmp.ne.s32.totalorder %s25, %s28
      %p37 = scmp.eq.s32.totalorder %s20, 1
      %p38 = por %p36, %p37
      %p39 = scmp.ne.s32.totalorder %s28, %s29
      %p40 = scmp.eq.s32.totalorder %s20, 0
      %p41 = por %p39, %p40
      %p42 = scmp.ne.s32.totalorder %s28, %s29
      %p43 = scmp.eq.s32.totalorder %s21, 1
      %p44 = por %p42, %p43
      %p46 = scmp.ne.s32.totalorder %s29, %s45
      %p47 = scmp.eq.s32.totalorder %s21, 0
      %p48 = por %p46, %p47
      %s49 = ssub.s32 %s15, %s22
      %p50 = scmp.eq.s32.totalorder %s49, 0
      %s52 = sadd.s32 %s51, 1
      %s53 = scalar_select %p50, %s51, %s52
      %p56 = pneg %p50
      %p57 = scmp.eq.s32.totalorder %s15, 1
      %p58 = por %p56, %p57
      %p59 = scmp.ne.s32.totalorder %s51, %s54
      %p60 = scmp.eq.s32.totalorder %s15, 0
      %p61 = por %p59, %p60
      %p62 = scmp.ne.s32.totalorder %s51, %s54
      %p63 = scmp.eq.s32.totalorder %s20, 1
      %p64 = por %p62, %p63
      %p65 = scmp.ne.s32.totalorder %s54, %s55
      %p66 = scmp.eq.s32.totalorder %s20, 0
      %p67 = por %p65, %p66
      %p68 = scmp.ne.s32.totalorder %s54, %s55
      %p69 = scmp.eq.s32.totalorder %s21, 1
      %p70 = por %p68, %p69
      %p72 = scmp.ne.s32.totalorder %s55, %s71
      %p73 = scmp.eq.s32.totalorder %s21, 0
      %p74 = por %p72, %p73
      %s75 = ssub.s32 %s15, %s22
      %p76 = scmp.eq.s32.totalorder %s75, 0
      %s78 = sadd.s32 %s77, 1
      %s79 = scalar_select %p76, %s77, %s78
      %p82 = pneg %p76
      %p83 = scmp.eq.s32.totalorder %s15, 1
      %p84 = por %p82, %p83
      %p85 = scmp.ne.s32.totalorder %s77, %s80
      %p86 = scmp.eq.s32.totalorder %s15, 0
      %p87 = por %p85, %p86
      %p88 = scmp.ne.s32.totalorder %s77, %s80
      %p89 = scmp.eq.s32.totalorder %s20, 1
      %p90 = por %p88, %p89
      %p91 = scmp.ne.s32.totalorder %s80, %s81
      %p92 = scmp.eq.s32.totalorder %s20, 0
      %p93 = por %p91, %p92
      %p94 = scmp.ne.s32.totalorder %s80, %s81
      %p95 = scmp.eq.s32.totalorder %s21, 1
      %p96 = por %p94, %p95
      %p98 = scmp.ne.s32.totalorder %s81, %s97
      %p99 = scmp.eq.s32.totalorder %s21, 0
      %p100 = por %p98, %p99
      %s101 = ssub.s32 %s15, %s22
      %p102 = scmp.eq.s32.totalorder %s101, 0
      %s104 = sadd.s32 %s103, 1
      %s105 = scalar_select %p102, %s103, %s104
      %p108 = pneg %p102
      %p109 = scmp.eq.s32.totalorder %s15, 1
      %p110 = por %p108, %p109
      %p111 = scmp.ne.s32.totalorder %s103, %s106
      %p112 = scmp.eq.s32.totalorder %s15, 0
      %p113 = por %p111, %p112
      %p114 = scmp.ne.s32.totalorder %s103, %s106
      %p115 = scmp.eq.s32.totalorder %s20, 1
      %p116 = por %p114, %p115
      %p117 = scmp.ne.s32.totalorder %s106, %s107
      %p118 = scmp.eq.s32.totalorder %s20, 0
      %p119 = por %p117, %p118
      %p120 = scmp.ne.s32.totalorder %s106, %s107
      %p121 = scmp.eq.s32.totalorder %s21, 1
      %p122 = por %p120, %p121
      %p124 = scmp.ne.s32.totalorder %s107, %s123
      %p125 = scmp.eq.s32.totalorder %s21, 0
      %p126 = por %p124, %p125
      %p127 = scmp.le.s32.totalorder 1, %s15
      %p128 = scmp.lt.s32.totalorder %s15, 3
      %p129 = pnand %p127, %p128
      %p130 = pneg %p129
      // Predicated region
      $region9: #{tpu_custom_call.1} parent=5 // pred_check
        _
      $region10: #{tpu_custom_call.1} parent=5 // pred_check_branch
        %132 = sbr.rel (%p129) target = $region12
      $region11: #{tpu_custom_call.1} parent=5 // pred_region
        %s133 = ssub.s32 %s15, 1
      $region12: #{tpu_custom_call.1} parent=5 // pred_fallthru
        _
      %p134 = scmp.lt.s32.totalorder %s15, 2
      // Predicated region
      $region13: #{tpu_custom_call.1} parent=5 // pred_check
        %p135 = pneg %p134
      $region14: #{tpu_custom_call.1} parent=5 // pred_check_branch
        %137 = sbr.rel (%p135) target = $region16
      $region15: #{tpu_custom_call.1} parent=5 // pred_region
        // Predicated region
        $region17: #{tpu_custom_call.1} parent=15 // pred_check
          %p138 = pneg %p35
        $region18: #{tpu_custom_call.1} parent=15 // pred_check_branch
          %140 = sbr.rel (%p138) target = $region20
        $region19: #{tpu_custom_call.1} parent=15 // pred_region
          %s141 = sand.u32 %s25, 1
          %s142 = scalar_lea.sflag [#allocation3], %s141
          %s143 = sand.u32 %s25, 1
          %s144 = smul.addr %s143, 16
          %s145 = scalar_lea.vmem [#allocation2], %s144
          %s147 = ssub.s32 256, 256
          %148 = vsyncadd %s142, %s147
          %s149 = smul.addr %s15, 2
          %s150 = smul.addr %s149, 128
          %s151 = scalar_lea.hbm %s0, %s150
          %s153 = sshll.u32 %s145, 4
          %s154 = int_to_ptr.vmem [resolvable:$true] %s153
          %156 = dma.hbm_to_vmem [thread:$0]  %s151, 256, %s154, %s142
        $region20: #{tpu_custom_call.1} parent=15 // pred_fallthru
          _
        // Predicated region
        $region21: #{tpu_custom_call.1} parent=15 // pred_check
          %p157 = pneg %p61
        $region22: #{tpu_custom_call.1} parent=15 // pred_check_branch
          %159 = sbr.rel (%p157) target = $region24
        $region23: #{tpu_custom_call.1} parent=15 // pred_region
          %s160 = sand.u32 %s15, 1
          %s161 = scalar_lea.sflag [#allocation5], %s160
          %s162 = sand.u32 %s51, 1
          %s163 = smul.addr %s162, 8
          %s164 = scalar_lea.vmem [#allocation4], %s163
          %s166 = ssub.s32 128, 128
          %167 = vsyncadd %s161, %s166
          %s168 = smul.addr %s15, 128
          %s169 = scalar_lea.hbm %s1, %s168
          %s171 = sshll.u32 %s164, 4
          %s172 = int_to_ptr.vmem [resolvable:$true] %s171
          %174 = dma.hbm_to_vmem [thread:$0]  %s169, 128, %s172, %s161
        $region24: #{tpu_custom_call.1} parent=15 // pred_fallthru
          _
        // Predicated region
        $region25: #{tpu_custom_call.1} parent=15 // pred_check
          %p175 = pneg %p87
        $region26: #{tpu_custom_call.1} parent=15 // pred_check_branch
          %177 = sbr.rel (%p175) target = $region28
        $region27: #{tpu_custom_call.1} parent=15 // pred_region
          %s178 = sand.u32 %s15, 1
          %s179 = scalar_lea.sflag [#allocation5], %s178
          %s180 = sand.u32 %s77, 1
          %s181 = smul.addr %s180, 16
          %s182 = scalar_lea.vmem [#allocation6], %s181
          %s184 = ssub.s32 256, 256
          %185 = vsyncadd %s179, %s184
          %s186 = smul.addr %s15, 2
          %s187 = smul.addr %s186, 128
          %s188 = scalar_lea.hbm %s2, %s187
          %s190 = sshll.u32 %s182, 4
          %s191 = int_to_ptr.vmem [resolvable:$true] %s190
          %193 = dma.hbm_to_vmem [thread:$0]  %s188, 256, %s191, %s179
        $region28: #{tpu_custom_call.1} parent=15 // pred_fallthru
          _
      $region16: #{tpu_custom_call.1} parent=5 // pred_fallthru
        _
      %p194 = scmp.le.s32.totalorder 1, %s15
      %p195 = scmp.lt.s32.totalorder %s15, 3
      %p196 = pnand %p194, %p195
      %p197 = pneg %p196
      // Predicated region
      $region29: #{tpu_custom_call.1} parent=5 // pred_check
        _
      $region30: #{tpu_custom_call.1} parent=5 // pred_check_branch
        %199 = sbr.rel (%p196) target = $region32
      $region31: #{tpu_custom_call.1} parent=5 // pred_region
        %s200 = ssub.s32 %s15, 1
        %s201 = sand.u32 %s28, 1
        %s202 = scalar_lea.sflag [#allocation3], %s201
        %s203 = sand.u32 %s28, 1
        %s204 = smul.addr %s203, 16
        %s205 = scalar_lea.vmem [#allocation2], %s204
        // Predicated region
        $region33: #{tpu_custom_call.1} parent=31 // pred_check
          %p206 = pneg %p41
        $region34: #{tpu_custom_call.1} parent=31 // pred_check_branch
          %208 = sbr.rel (%p206) target = $region36
        $region35: #{tpu_custom_call.1} parent=31 // pred_region
          %209 = dma.done %s202, 256
        $region36: #{tpu_custom_call.1} parent=31 // pred_fallthru
          _
        %s210 = sand.u32 %s20, 1
        %s211 = scalar_lea.sflag [#allocation5], %s210
        %s212 = sand.u32 %s54, 1
        %s213 = smul.addr %s212, 8
        %s214 = scalar_lea.vmem [#allocation4], %s213
        // Predicated region
        $region37: #{tpu_custom_call.1} parent=31 // pred_check
          %p215 = pneg %p67
        $region38: #{tpu_custom_call.1} parent=31 // pred_check_branch
          %217 = sbr.rel (%p215) target = $region40
        $region39: #{tpu_custom_call.1} parent=31 // pred_region
          %218 = dma.done %s211, 128
        $region40: #{tpu_custom_call.1} parent=31 // pred_fallthru
          _
        %s219 = sand.u32 %s20, 1
        %s220 = scalar_lea.sflag [#allocation5], %s219
        %s221 = sand.u32 %s80, 1
        %s222 = smul.addr %s221, 16
        %s223 = scalar_lea.vmem [#allocation6], %s222
        // Predicated region
        $region41: #{tpu_custom_call.1} parent=31 // pred_check
          %p224 = pneg %p93
        $region42: #{tpu_custom_call.1} parent=31 // pred_check_branch
          %226 = sbr.rel (%p224) target = $region44
        $region43: #{tpu_custom_call.1} parent=31 // pred_region
          %227 = dma.done %s220, 256
        $region44: #{tpu_custom_call.1} parent=31 // pred_fallthru
          _
        %s228 = sand.u32 %s28, 1
        %s229 = scalar_lea.sflag [#allocation3], %s228
        %s230 = sand.u32 %s28, 1
        %s231 = smul.addr %s230, 16
        %s232 = scalar_lea.vmem [#allocation2], %s231
        %p233 = pneg %p41
        %p234 = pneg %p38
        %s235 = sand.u32 %s20, 1
        %s236 = scalar_lea.sflag [#allocation5], %s235
        %s237 = sand.u32 %s54, 1
        %s238 = smul.addr %s237, 8
        %s239 = scalar_lea.vmem [#allocation4], %s238
        %p240 = pneg %p67
        %p241 = pneg %p64
        %s242 = sand.u32 %s20, 1
        %s243 = scalar_lea.sflag [#allocation5], %s242
        %s244 = sand.u32 %s80, 1
        %s245 = smul.addr %s244, 16
        %s246 = scalar_lea.vmem [#allocation6], %s245
        %p247 = pneg %p93
        %p248 = pneg %p90
        %p249 = pneg %p119
        %p250 = pneg %p116
        %p251 = scmp.lt.s32.totalorder %s20, 1
        %s252 = scalar_select %p251, %s20, 1
        %s253 = smul.addr %s252, 8
        %s254 = scalar_lea.vmem %s3, %s253
        %p255 = scmp.lt.s32.totalorder %s20, 1
        %s256 = scalar_select %p255, %s20, 1
        %s257 = smul.addr %s256, 8
        %s258 = scalar_lea.vmem %s3, %s257
        %v259 = vld [vmem:[%s214] sm:$0xff]
        %v260 = vmul.f32 %v259, 36.556713
        %v261 = vand.u32 2147483647, %v260
        %vm262 = vcmp.le.f32.partialorder %v261, 0.7853982
        %vm263 = vcmp.lt.s32.totalorder %v260, 0
        %v264 = vand.u32 %v260, 2139095040
        %v265 = vshrl.u32 %v264, 23
        %v266 = vsub.s32 %v265, 127
        %v267 = vand.u32 2147483647, %v260
        %v268 = vand.u32 %v267, 8388607
        %v269 = vor.u32 %v268, 8388608
        %v270 = vsub.s32 0, %v269
        %v271 = vadd.s32 %v266, 1
        %vm272 = vcmp.gt.s32.totalorder %v271, 0
        %v273 = vsel %vm272, %v271, 0
        %v274 = vshrl.u32 %v273, 5
        %v275 = vand.u32 %v273, 31
        %v276 = vsub.s32 32, %v275
        %v277 = vshrl.u32 683565275, %v276
        %v278 = vshll.u32 683565275, %v275
        %v279 = vshrl.u32 2475754826, %v276
        %v280 = vor.u32 %v278, %v279
        %v281 = vshll.u32 2475754826, %v275
        %v282 = vshrl.u32 2131351028, %v276
        %v283 = vor.u32 %v281, %v282
        %v284 = vshll.u32 2131351028, %v275
        %v285 = vshrl.u32 2102212464, %v276
        %v286 = vor.u32 %v284, %v285
        %v287 = vshll.u32 2102212464, %v275
        %v288 = vshrl.u32 920167782, %v276
        %v289 = vor.u32 %v287, %v288
        %v290 = vshll.u32 920167782, %v275
        %v291 = vshrl.u32 1326507024, %v276
        %v292 = vor.u32 %v290, %v291
        %vm293 = vcmp.lt.s32.totalorder %v274, 1
        %vm294 = vcmp.lt.s32.totalorder %v274, 2
        %vm295 = vcmp.lt.s32.totalorder %v274, 3
        %vm296 = vcmp.lt.s32.totalorder %v274, 4
        %v297 = vsel %vm293, %v277, %v280
        %v298 = vsel %vm296, %v286, 2102212464
        %v299 = vsel %vm295, %v283, %v298
        %v300 = vsel %vm294, %v297, %v299
        %v301 = vsel %vm293, %v280, %v283
        %v302 = vsel %vm296, %v289, 920167782
        %v303 = vsel %vm295, %v286, %v302
        %v304 = vsel %vm294, %v301, %v303
        %v305 = vsel %vm293, %v283, %v286
        %v306 = vsel %vm296, %v292, 1326507024
        %v307 = vsel %vm295, %v289, %v306
        %v308 = vsel %vm294, %v305, %v307
        %v309 = vshll.u32 %v269, 8
        %v310 = vmul.u32.u64.compose %v309, %v308
        %v311 = vextract.low.u32 %v310
        %v312 = vextract.high.u32 %v310
        %v313 = vmul.u32.u64.compose %v309, %v304
        %v314 = vextract.low.u32 %v313
        %v315 = vextract.high.u32 %v313
        %v316 = vmul.u32 %v309, %v300
        %v317 = vadd.s32 %v312, %v314
        %vm318 = vc.u32 %v312, %v314
        %v319 = vadd.s32 %v315, 1
        %v320 = vsel %vm318, %v319, %v315
        %v321 = vadd.s32 %v316, %v320
        %v322 = vadd.s32 %v321, 536870912
        %v323 = vshrl.u32 %v322, 30
        %v324 = vshll.u32 %v323, 30
        %v325 = vsub.s32 %v321, %v324
        %vm326 = vcmp.lt.s32.totalorder %v325, 0
        %v327 = vsub.s32 0, %v325
        %v328 = vsel %vm326, %v327, %v325
        %v329 = vclz %v328
        %v330 = vsub.s32 %v329, 2
        %vm331 = vcmp.gt.s32.totalorder 0, %v330
        %v332 = vsel %vm331, 0, %v330
        %v333 = vsub.s32 32, %v332
        %v334 = vshll.u32 %v325, %v332
        %v335 = vshrl.u32 %v317, %v333
        %v336 = vor.u32 %v334, %v335
        %v337 = vsub.s32 4294967266, %v332
        %v338 = vadd.s32 %v337, 127
        %v339 = vshll.u32 %v338, 23
        %v340 = vor.u32 4788187, %v339
        %v341 = vand.u32 2147483647, %v340
        %v343 = vcvt.s32.f32 %v336
        %v344 = vmul.f32 %v343, %v341
        %v345 = vxor.u32 %v344, 2147483648
        %v346 = vsel %vm263, %v345, %v344
        %v347 = vsub.s32 4, %v323
        %v348 = vsel %vm263, %v347, %v323
        %v349 = vsel %vm262, %v260, %v346
        %v350 = vsel %vm262, 0, %v348
        %v351 = vcosq.f32.pop %v349
        %v352 = vsinq.f32.pop %v349
        %vm353 = vweird.f32 %v260
        %v354 = vand.u32 %v350, 3
        %vm355 = vcmp.lt.s32.totalorder %v354, 2
        %vm356 = vcmp.eq.s32.totalorder %v354, 0
        %v357 = vxor.u32 %v352, 2147483648
        %v358 = vsel %vm356, %v351, %v357
        %vm359 = vcmp.eq.s32.totalorder %v354, 2
        %v360 = vxor.u32 %v351, 2147483648
        %v361 = vsel %vm359, %v360, %v352
        %v362 = vsel %vm355, %v358, %v361
        %v363 = vsel %vm353, nan, %v362
        %v364 = vand.u32 2147483647, %v260
        %vm365 = vcmp.le.f32.partialorder %v364, 0.7853982
        %vm366 = vcmp.lt.s32.totalorder %v260, 0
        %v367 = vand.u32 %v260, 2139095040
        %v368 = vshrl.u32 %v367, 23
        %v369 = vsub.s32 %v368, 127
        %v370 = vand.u32 2147483647, %v260
        %v371 = vand.u32 %v370, 8388607
        %v372 = vor.u32 %v371, 8388608
        %v373 = vsub.s32 0, %v372
        %v374 = vadd.s32 %v369, 1
        %vm375 = vcmp.gt.s32.totalorder %v374, 0
        %v376 = vsel %vm375, %v374, 0
        %v377 = vshrl.u32 %v376, 5
        %v378 = vand.u32 %v376, 31
        %v379 = vsub.s32 32, %v378
        %v380 = vshrl.u32 683565275, %v379
        %v381 = vshll.u32 683565275, %v378
        %v382 = vshrl.u32 2475754826, %v379
        %v383 = vor.u32 %v381, %v382
        %v384 = vshll.u32 2475754826, %v378
        %v385 = vshrl.u32 2131351028, %v379
        %v386 = vor.u32 %v384, %v385
        %v387 = vshll.u32 2131351028, %v378
        %v388 = vshrl.u32 2102212464, %v379
        %v389 = vor.u32 %v387, %v388
        %v390 = vshll.u32 2102212464, %v378
        %v391 = vshrl.u32 920167782, %v379
        %v392 = vor.u32 %v390, %v391
        %v393 = vshll.u32 920167782, %v378
        %v394 = vshrl.u32 1326507024, %v379
        %v395 = vor.u32 %v393, %v394
        %vm396 = vcmp.lt.s32.totalorder %v377, 1
        %vm397 = vcmp.lt.s32.totalorder %v377, 2
        %vm398 = vcmp.lt.s32.totalorder %v377, 3
        %vm399 = vcmp.lt.s32.totalorder %v377, 4
        %v400 = vsel %vm396, %v380, %v383
        %v401 = vsel %vm399, %v389, 2102212464
        %v402 = vsel %vm398, %v386, %v401
        %v403 = vsel %vm397, %v400, %v402
        %v404 = vsel %vm396, %v383, %v386
        %v405 = vsel %vm399, %v392, 920167782
        %v406 = vsel %vm398, %v389, %v405
        %v407 = vsel %vm397, %v404, %v406
        %v408 = vsel %vm396, %v386, %v389
        %v409 = vsel %vm399, %v395, 1326507024
        %v410 = vsel %vm398, %v392, %v409
        %v411 = vsel %vm397, %v408, %v410
        %v412 = vshll.u32 %v372, 8
        %v413 = vmul.u32.u64.compose %v412, %v411
        %v414 = vextract.low.u32 %v413
        %v415 = vextract.high.u32 %v413
        %v416 = vmul.u32.u64.compose %v412, %v407
        %v417 = vextract.low.u32 %v416
        %v418 = vextract.high.u32 %v416
        %v419 = vmul.u32 %v412, %v403
        %v420 = vadd.s32 %v415, %v417
        %vm421 = vc.u32 %v415, %v417
        %v422 = vadd.s32 %v418, 1
        %v423 = vsel %vm421, %v422, %v418
        %v424 = vadd.s32 %v419, %v423
        %v425 = vadd.s32 %v424, 536870912
        %v426 = vshrl.u32 %v425, 30
        %v427 = vshll.u32 %v426, 30
        %v428 = vsub.s32 %v424, %v427
        %vm429 = vcmp.lt.s32.totalorder %v428, 0
        %v430 = vsub.s32 0, %v428
        %v431 = vsel %vm429, %v430, %v428
        %v432 = vclz %v431
        %v433 = vsub.s32 %v432, 2
        %vm434 = vcmp.gt.s32.totalorder 0, %v433
        %v435 = vsel %vm434, 0, %v433
        %v436 = vsub.s32 32, %v435
        %v437 = vshll.u32 %v428, %v435
        %v438 = vshrl.u32 %v420, %v436
        %v439 = vor.u32 %v437, %v438
        %v440 = vsub.s32 4294967266, %v435
        %v441 = vadd.s32 %v440, 127
        %v442 = vshll.u32 %v441, 23
        %v443 = vor.u32 4788187, %v442
        %v444 = vand.u32 2147483647, %v443
        %v446 = vcvt.s32.f32 %v439
        %v447 = vmul.f32 %v446, %v444
        %v448 = vxor.u32 %v447, 2147483648
        %v449 = vsel %vm366, %v448, %v447
        %v450 = vsub.s32 4, %v426
        %v451 = vsel %vm366, %v450, %v426
        %v452 = vsel %vm365, %v260, %v449
        %v453 = vsel %vm365, 0, %v451
        %v454 = vcosq.f32.pop %v452
        %v455 = vsinq.f32.pop %v452
        %vm456 = vweird.f32 %v260
        %v457 = vadd.s32 %v453, 3
        %v458 = vand.u32 %v457, 3
        %vm459 = vcmp.lt.s32.totalorder %v458, 2
        %vm460 = vcmp.eq.s32.totalorder %v458, 0
        %v461 = vxor.u32 %v455, 2147483648
        %v462 = vsel %vm460, %v454, %v461
        %vm463 = vcmp.eq.s32.totalorder %v458, 2
        %v464 = vxor.u32 %v454, 2147483648
        %v465 = vsel %vm463, %v464, %v455
        %v466 = vsel %vm459, %v462, %v465
        %v467 = vsel %vm456, nan, %v466
        %v468 = vld [vmem:[%s205] sm:$0xff]
        %v469 = vld [vmem:[%s205 + $0x8] sm:$0xff]
        %v470 = vld [vmem:[%s223] sm:$0xff]
        %v471 = vld [vmem:[%s223 + $0x8] sm:$0xff]
        %v472 = vmul.f32 %v468, %v363
        %v473 = vmul.f32 %v469, %v467
        %v474 = vsub.f32 %v472, %v473
        %v475 = vsub.f32 %v474, %v470
        %v476 = vmul.f32 %v468, %v467
        %v477 = vmul.f32 %v469, %v363
        %v478 = vadd.f32 %v476, %v477
        %v479 = vsub.f32 %v478, %v471
        %v480 = vmul.f32 %v475, %v475
        %v481 = vmul.f32 %v479, %v479
        %v482 = vadd.f32 %v480, %v481
        %v483 = vrsqrt.pop %v482
        %v484 = vmul.f32 %v482, %v483
        %vm485 = vcmp.eq.f32.partialorder %v482, inf
        %v486 = vsel %vm485, %v482, %v484
        %vm487 = vcmp.eq.f32.partialorder %v482, 0.0
        %v488 = vand.u32 %v482, 2147483648
        %v489 = vsel %vm487, %v488, %v486
        %490 = vadd.xlane.f32.xlu0 %v489
        %v491 = vpop.xlane.xlu0 %490
        %v492 = vsub.f32 9.0, %v491
        %vm493 = vcmask 7168
        %494 = vst.msk [vmem:[%s258] sm:$0xff] %vm493, %v492
        %p495 = scmp.lt.s32.totalorder %s20, 1
        %s496 = scalar_select %p495, %s20, 1
        %s497 = smul.addr %s496, 8
        %s498 = scalar_lea.vmem %s3, %s497
        // Predicated region
        $region45: #{tpu_custom_call.1} parent=31 // pred_check
          %p499 = pneg %p116
        $region46: #{tpu_custom_call.1} parent=31 // pred_check_branch
          %501 = sbr.rel (%p499) target = $region48
        $region47: #{tpu_custom_call.1} parent=31 // pred_region
          _
        $region48: #{tpu_custom_call.1} parent=31 // pred_fallthru
          _
      $region32: #{tpu_custom_call.1} parent=5 // pred_fallthru
        _
      %p502 = scmp.le.s32.totalorder 2, %s15
      // Predicated region
      $region49: #{tpu_custom_call.1} parent=5 // pred_check
        %p503 = pneg %p502
      $region50: #{tpu_custom_call.1} parent=5 // pred_check_branch
        %505 = sbr.rel (%p503) target = $region52
      $region51: #{tpu_custom_call.1} parent=5 // pred_region
        %s506 = ssub.s32 %s15, 2
        // Predicated region
        $region53: #{tpu_custom_call.1} parent=51 // pred_check
          %p507 = pneg %p122
        $region54: #{tpu_custom_call.1} parent=51 // pred_check_branch
          %509 = sbr.rel (%p507) target = $region56
        $region55: #{tpu_custom_call.1} parent=51 // pred_region
          %p510 = scmp.lt.s32.totalorder %s21, 1
          %s511 = scalar_select %p510, %s21, 1
          %s512 = smul.addr %s511, 8
          %s513 = scalar_lea.vmem %s3, %s512
        $region56: #{tpu_custom_call.1} parent=51 // pred_fallthru
          _
      $region52: #{tpu_custom_call.1} parent=5 // pred_fallthru
        _
    $region6: #{tpu_custom_call.1} parent=1 // loop_footer
      %s19 = sadd.s32 1, %s15
    $region7: #{tpu_custom_call.1} parent=1 // loop_footer_branch
      %14 = sbr.rel target = $region3
    $region8: #{tpu_custom_call.1} parent=1 // loop_exit
      _
    %514 = vsyncpa [#allocation3], 1
    %s515 = scalar_lea.sflag [#allocation3], 1
    %516 = vsyncpa %s515, 1
    %517 = vsyncpa [#allocation5], 1
    %s518 = scalar_lea.sflag [#allocation5], 1
    %519 = vsyncpa %s518, 1

</llo_original>
